<compile_context>
chip_gen: v7x
topology: tpu7x:2x2x1
jax: 0.10.0
libtpu: 0.0.40
codegen_flags: <defaults>
</compile_context>

<pallas_src>
import functools

import jax
import jax.numpy as jnp
from jax.experimental import pallas as pl
from jax.experimental.pallas import tpu as pltpu

_MIB = 1024 * 1024


def _nonlinear(x):
    # Chosen pointwise nonlinearity (ReLU); dtype-safe zero avoids promotion.
    return jnp.maximum(x, jnp.zeros((), dtype=x.dtype))


def _nonlipb_kernel(x_ref, o_ref, *, in_channels, num_channels, hw, flat_layout):
    # x_ref/o_ref: (TM, L) tile in VMEM.
    x = x_ref[...]
    if in_channels <= 0:                      # static: pure passthrough
        o_ref[...] = x
        return
    if in_channels >= num_channels:           # static: pure nonlinearity
        o_ref[...] = _nonlinear(x)
        return

    tm, lanes = x.shape
    base = pl.program_id(0) * tm              # global row offset of this tile
    if flat_layout:
        # Lane-dense repacked layout: recover channel id from the flat NCHW
        # element index f = global_row * lanes + lane.  The extra iota/div/mod
        # is VPU work that hides completely under DMA in this mem-bound kernel.
        # TODO(synk): widen the flat index past int32 for tensors > 2**31 elems.
        row = jax.lax.broadcasted_iota(jnp.int32, (tm, lanes), 0)
        col = jax.lax.broadcasted_iota(jnp.int32, (tm, lanes), 1)
        flat = (base + row) * lanes + col
        chan = (flat // hw) % num_channels
    else:
        # Row layout (one row per (n, c) pair): channel id == global_row % C.
        # (TM, 1) column mask broadcast across the lane axis.
        row = jax.lax.broadcasted_iota(jnp.int32, (tm, 1), 0)
        chan = (base + row) % num_channels
    o_ref[...] = jnp.where(chan < in_channels, _nonlinear(x), x)


def _vmem_budget():
    """Generation-aware scoped-VMEM limit and per-buffer block-byte target.

    128 MiB parts (v5e/v6e) -> 96 MiB limit / 16 MiB blocks;
     64 MiB parts (v7x)     -> 48 MiB limit /  8 MiB blocks.
    4 live buffers (double-buffered in + out) plus compiler scratch headroom.
    """
    phys = 64 * _MIB
    try:
        phys = int(pltpu.get_tpu_info().vmem_capacity_bytes)
    except Exception:
        pass
    limit = min((phys * 3) // 4, 96 * _MIB)
    target = max(2 * _MIB, limit // 6)
    return limit, target


def _pick_lane_width(total):
    """Largest-preference lane-dense width (multiple of 128) dividing `total`."""
    for lanes in (512, 1024, 2048, 4096, 256, 128):
        if total % lanes == 0:
            return lanes
    return None


def _choose_row_tile(rows, lanes, itemsize, target_block_bytes):
    """Row-tile TM: sublane-aligned, sized to ~target_block_bytes per buffer."""
    sublane = 8 * max(1, 4 // itemsize)       # 8 (f32) / 16 (bf16) / 32 (i8)
    if rows <= sublane:
        return rows                           # single full-extent block
    rows_budget = max(1, target_block_bytes // max(1, lanes * itemsize))
    tm = max(sublane, (min(rows, rows_budget) // sublane) * sublane)
    return rows if tm >= rows else tm


def nonlipb(x, in_channels, *, donate=False, target_block_bytes=None):
    """NonLiPB forward: ReLU on channels [0, in_channels), identity on the rest.

    x: (N, C, H, W) array (NCHW, matching the PyTorch module).
    donate: set True only if the caller actually donates `x`; aliases the input
            buffer to the output so no extra allocation is made.
    """
    N, C, H, W = x.shape
    if in_channels <= 0:
        # Early-out: pure passthrough.  Avoids 2x full-array HBM traffic for a
        # no-op copy.
        return x
    in_channels = min(in_channels, C)

    hw = H * W
    total = N * C * hw
    itemsize = jnp.dtype(x.dtype).itemsize

    vmem_limit, default_block = _vmem_budget()
    if target_block_bytes is None:
        target_block_bytes = default_block

    sublane = 8 * max(1, 4 // itemsize)
    # Layout selection: prefer the (N*C, H*W) row layout (cheapest mask) when
    # the spatial slab is already lane-dense (multiple of 128) and one
    # sublane-row of it fits the block budget; otherwise repack the flat
    # tensor to a lane-dense width and recover channel ids from flat indices.
    use_row = (hw % 128 == 0) and (sublane * hw * itemsize <= target_block_bytes)
    if use_row:
        rows, lanes, flat_layout = N * C, hw, False
    else:
        lanes = _pick_lane_width(total)
        if lanes is not None:
            rows, flat_layout = total // lanes, True
        else:
            # TODO(synk): pad to a lane-dense width instead of falling back to
            # masked partial stores when no multiple of 128 divides the total.
            rows, lanes, flat_layout = N * C, hw, False
    x2d = x.reshape(rows, lanes)              # row-major flatten: free relayout

    tm = _choose_row_tile(rows, lanes, itemsize, target_block_bytes)
    grid = (pl.cdiv(rows, tm),)

    kernel = functools.partial(
        _nonlipb_kernel,
        in_channels=in_channels,
        num_channels=C,
        hw=hw,
        flat_layout=flat_layout,
    )

    # TODO(synk): on the donate=True path with 0 < in_channels < C, grid only
    # over the head channels so the passthrough tail is never DMA'd at all.
    extra = {"input_output_aliases": {0: 0}} if donate else {}

    out2d = pl.pallas_call(
        kernel,
        out_shape=jax.ShapeDtypeStruct((rows, lanes), x.dtype),
        grid_spec=pltpu.PrefetchScalarGridSpec(
            num_scalar_prefetch=0,
            grid=grid,
            in_specs=[pl.BlockSpec((tm, lanes), lambda i: (i, 0))],
            out_specs=pl.BlockSpec((tm, lanes), lambda i: (i, 0)),
        ),
        compiler_params=pltpu.CompilerParams(
            # Row tiles are independent.
            # TODO(synk): switch to pltpu.CORE_PARALLEL on multi-TensorCore
            # parts (v7x) once per-chip core-count detection is plumbed.
            dimension_semantics=("parallel",),
            vmem_limit_bytes=vmem_limit,
        ),
        cost_estimate=pl.CostEstimate(
            flops=N * in_channels * hw,
            transcendentals=0,
            bytes_accessed=2 * total * itemsize,
        ),
        **extra,
    )(x2d)

    return out2d.reshape(N, C, H, W)


def nonlipb_ref(x, in_channels):
    # Pure-JAX reference mirroring the PyTorch forward exactly.
    head = _nonlinear(x[:, :in_channels])
    tail = x[:, in_channels:]
    return jnp.concatenate((head, tail), axis=1)


if __name__ == "__main__":
    root = jax.random.PRNGKey(0)

    # (shape, in_channels, target_block_bytes override) -- all small & fast.
    cases = [
        ((2, 4, 16, 16), 2, None),       # primary: row layout, single block
        ((4, 6, 32, 32), 3, 64 * 1024),  # row layout, 2-step grid + partial tail tile
        ((2, 4, 8, 12), 3, None),        # lane-dense repack (H*W=96 -> lanes=256)
        ((2, 4, 7, 7), 2, None),         # fallback row layout (narrow lanes)
        ((2, 4, 16, 16), 4, None),       # static pure-nonlinearity branch
        ((2, 4, 16, 16), 0, None),       # early-out passthrough
    ]
    keys = jax.random.split(root, len(cases))
    for (shape, in_ch, blk), k in zip(cases, keys):
        x = jax.random.normal(k, shape, dtype=jnp.float32)
        out = jax.block_until_ready(nonlipb(x, in_ch, target_block_bytes=blk))
        ref = nonlipb_ref(x, in_ch)
        assert out.shape == shape
        assert jnp.allclose(out, ref, atol=0.0, rtol=0.0), (
            f"mismatch vs reference for shape={shape}, in_channels={in_ch}")

    print("KERNEL_OK")
</pallas_src>

<mosaic_0001>
module attributes {stable_mosaic.version = 11 : i64} {
  func.func @_nonlipb_kernel(%arg0: i32, %arg1: memref<8x256xf32, #tpu.memory_space<vmem>>, %arg2: memref<8x256xf32, #tpu.memory_space<vmem>>) attributes {dimension_semantics = [#tpu.dimension_semantics<parallel>], iteration_bounds = array<i64: 1>, scalar_prefetch = 0 : i64, scratch_operands = 0 : i64, tpu.core_type = #tpu.core_type<tc>, window_params = [{transform_indices = @transform_0, window_bounds = array<i64: 8, 256>}, {transform_indices = @transform_1, window_bounds = array<i64: 8, 256>}]} {
    %c0 = arith.constant 0 : index
    %c0_0 = arith.constant 0 : index
    %0 = vector.load %arg1[%c0, %c0_0] : memref<8x256xf32, #tpu.memory_space<vmem>>, vector<8x256xf32>
    %c8_i32 = arith.constant 8 : i32
    %1 = arith.muli %arg0, %c8_i32 : i32
    %2 = tpu.iota {dimensions = array<i32: 0>} : vector<8x1xi32>
    %3 = vector.broadcast %1 : i32 to vector<8x1xi32>
    %4 = arith.addi %3, %2 : vector<8x1xi32>
    %c4_i32 = arith.constant 4 : i32
    %c0_i32 = arith.constant 0 : i32
    %5 = arith.cmpi eq, %c4_i32, %c0_i32 : i32
    %c1_i32 = arith.constant 1 : i32
    %6 = arith.select %5, %c1_i32, %c4_i32 : i32
    %7 = vector.broadcast %6 : i32 to vector<8x1xi32>
    %8 = arith.remsi %4, %7 : vector<8x1xi32>
    %c0_i32_1 = arith.constant 0 : i32
    %9 = vector.broadcast %c0_i32_1 : i32 to vector<8x1xi32>
    %10 = arith.cmpi ne, %8, %9 : vector<8x1xi32>
    %c0_i32_2 = arith.constant 0 : i32
    %11 = vector.broadcast %c0_i32_2 : i32 to vector<8x1xi32>
    %12 = arith.cmpi slt, %8, %11 : vector<8x1xi32>
    %c0_i32_3 = arith.constant 0 : i32
    %13 = arith.cmpi slt, %6, %c0_i32_3 : i32
    %14 = vector.broadcast %13 : i1 to vector<8x1xi1>
    %15 = vector.broadcast %14 : vector<8x1xi1> to vector<8x1xi1>
    %16 = arith.xori %12, %15 : vector<8x1xi1>
    %17 = arith.andi %16, %10 : vector<8x1xi1>
    %18 = vector.broadcast %6 : i32 to vector<8x1xi32>
    %19 = arith.addi %8, %18 : vector<8x1xi32>
    %20 = arith.select %17, %19, %8 : vector<8x1xi1>, vector<8x1xi32>
    %c2_i32 = arith.constant 2 : i32
    %21 = vector.broadcast %c2_i32 : i32 to vector<8x1xi32>
    %22 = arith.cmpi slt, %20, %21 : vector<8x1xi32>
    %cst = arith.constant 0.000000e+00 : f32
    %23 = vector.broadcast %cst : f32 to vector<8x256xf32>
    %24 = arith.maximumf %0, %23 : vector<8x256xf32>
    %25 = vector.shape_cast %22 : vector<8x1xi1> to vector<8x1xi1>
    %26 = vector.broadcast %25 : vector<8x1xi1> to vector<8x256xi1>
    %27 = arith.select %26, %24, %0 : vector<8x256xi1>, vector<8x256xf32>
    %c0_4 = arith.constant 0 : index
    %c0_5 = arith.constant 0 : index
    %28 = vector.load %arg2[%c0_4, %c0_5] : memref<8x256xf32, #tpu.memory_space<vmem>>, vector<8x256xf32>
    tpu.vector_store %arg2[%c0_4, %c0_5], %27 {strides = array<i32>} : memref<8x256xf32, #tpu.memory_space<vmem>>, vector<8x256xf32>,
    return
  }
  func.func @transform_0(%arg0: i32) -> (i32, i32) {
    %c0_i32 = arith.constant 0 : i32
    %c0_i32_0 = arith.constant 0 : i32
    return %arg0, %c0_i32 : i32, i32
  }
  func.func @transform_1(%arg0: i32) -> (i32, i32) {
    %c0_i32 = arith.constant 0 : i32
    %c0_i32_0 = arith.constant 0 : i32
    return %arg0, %c0_i32 : i32, i32
  }
}

</mosaic_0001>

<llo_original>
// kernel: tpu_custom_call.1
$region0: #{tpu_custom_call.1}
  #allocation0 [shape = 'u32[]', space=smem, size = 0x4, offset = 0x4, fixed_abs, tag = 'smem constant byte address 0x4 - core index']
  #allocation1 [shape = 'u32[144,128]{1,0:T(1,128)}', space=vmem, size = 0x12000, scoped, tag = 'internal scratch']
  %s0 = inlined_call_operand.hbm [shape: f32[8,256], index: 0, kind: input, shape index: {}]
  %s1 = inlined_call_operand.hbm [shape: f32[8,256], index: 1, kind: output, shape index: {}]
  %s2 = sld [smem:[#allocation0]]
  $region18: #{tpu_custom_call.1} parent=0
    _
  %s4 = ssub.s32 1, %s2
  %s5 = scalar_select 0, %s4, %s2
  $region1: #{tpu_custom_call.1} parent=0
    #allocation2 [shape = 'u8[8192]{0}', space=vmem, size = 0x2000, scoped, tag = 'input window, operand 0, single buffered']
    #allocation3 [shape = 's32[1]{0}', space=sflag, size = 0x4, scoped, tag = 'scoped memory for tpu_custom_call.1']
    #allocation4 [shape = 's32[1]{0}', space=sflag, size = 0x4, scoped, tag = 'scoped memory for tpu_custom_call.1']
    #allocation5 [shape = 'u8[8192]{0}', space=vmem, size = 0x2000, scoped, tag = 'output window, operand 0, single buffered']
    %6 = vsyncpa [#allocation3], 0
    %7 = vsyncpa [#allocation4], 0
    // Predicated region
    $region2: #{tpu_custom_call.1} parent=1 // pred_check
      _
    $region3: #{tpu_custom_call.1} parent=1 // pred_check_branch
      %9 = sbr.rel (0) target = $region5
    $region4: #{tpu_custom_call.1} parent=1 // pred_region
      %s11 = ssub.s32 256, 256
      %12 = vsyncadd [#allocation3], %s11
      %s14 = sshll.u32 [#allocation2], 4
      %s15 = int_to_ptr.vmem [resolvable:$true] %s14
      %17 = dma.hbm_to_vmem [thread:$0]  %s0, 256, %s15, [#allocation3]
    $region5: #{tpu_custom_call.1} parent=1 // pred_fallthru
      _
    // Predicated region
    $region6: #{tpu_custom_call.1} parent=1 // pred_check
      _
    $region7: #{tpu_custom_call.1} parent=1 // pred_check_branch
      %19 = sbr.rel (0) target = $region9
    $region8: #{tpu_custom_call.1} parent=1 // pred_region
      %20 = dma.done [#allocation3], 256
    $region9: #{tpu_custom_call.1} parent=1 // pred_fallthru
      _
    %v21 = vld [vmem:[#allocation2] sm:$0xff]
    %v22 = vld [vmem:[#allocation2 + $0x8] sm:$0xff]
    %s23 = smul.u32 0, 8
    %v24 = vlaneseq
    %v25 = vshrl.u32 %v24, 7
    %v26 = vstv %s23
    %v27 = vadd.s32 %v26, %v25
    %vm28 = vcmp.lt.s32.totalorder %v27, 0
    %v29 = vsub.s32 0, %v27
    %v30 = vsel %vm28, %v29, %v27
    %v31 = vshrl.u32 %v30, 2
    %v32 = vand.u32 %v30, 3
    %v33 = vsub.s32 0, %v32
    %v34 = vsel %vm28, %v33, %v32
    %vm35 = vcmp.ne.s32.totalorder %v34, 0
    %vm36 = vcmp.lt.s32.totalorder %v34, 0
    %vm37 = vmand %vm36, %vm35
    %v38 = vadd.s32 %v34, 4
    %v39 = vsel %vm37, %v38, %v34
    %vm40 = vcmp.lt.s32.totalorder %v39, 2
    %v41 = vmax.f32 %v21, 0.0
    %v42 = vmax.f32 %v22, 0.0
    %v43 = vsel %vm40, 1, 0
    %vm44 = vcmp.eq.s32.totalorder %v43, 1
    %v45 = vsel %vm44, %v41, %v21
    %v46 = vsel %vm44, %v42, %v22
    %47 = vst [vmem:[#allocation5] sm:$0xff] %v45
    %48 = vst [vmem:[#allocation5 + $0x8] sm:$0xff] %v46
    // Predicated region
    $region10: #{tpu_custom_call.1} parent=1 // pred_check
      _
    $region11: #{tpu_custom_call.1} parent=1 // pred_check_branch
      %50 = sbr.rel (0) target = $region13
    $region12: #{tpu_custom_call.1} parent=1 // pred_region
      %s52 = ssub.s32 256, 256
      %53 = vsyncadd [#allocation4], %s52
      %s55 = sshll.u32 [#allocation5], 4
      %s56 = int_to_ptr.vmem [resolvable:$true] %s55
      %58 = dma.vmem_to_hbm [thread:$0]  %s56, 256, %s1, [#allocation4]
    $region13: #{tpu_custom_call.1} parent=1 // pred_fallthru
      _
    // Predicated region
    $region14: #{tpu_custom_call.1} parent=1 // pred_check
      _
    $region15: #{tpu_custom_call.1} parent=1 // pred_check_branch
      %60 = sbr.rel (0) target = $region17
    $region16: #{tpu_custom_call.1} parent=1 // pred_region
      %61 = dma.done [#allocation4], 256
    $region17: #{tpu_custom_call.1} parent=1 // pred_fallthru
      _
    %62 = vsyncpa [#allocation3], 1
    %63 = vsyncpa [#allocation4], 1

</llo_original>
